<compile_context>
chip_gen: v5e
topology: v5e:2x2
jax: 0.10.0
libtpu: 0.0.40
codegen_flags: <defaults>
</compile_context>

<pallas_src>
import functools

import jax
import jax.numpy as jnp
from jax import lax
from jax.experimental import pallas as pl
from jax.experimental.pallas import tpu as pltpu

# NN_INPUT_SIZE is an external constant in the original repo (board encoding);
# pick 18 deterministically here.
NN_INPUT_SIZE = 18
H1, H2, H3 = 54, 27, 9

_TB_MAX = 8192          # max batch-tile width (lanes)
_XLA_FASTPATH_MAX_B = 256

# --- packed resident-operand layout (row offsets are multiples of 8 so every
# --- in-kernel slice is sublane-aligned) ------------------------------------
_W_COLS = H1                                  # widest fan-in among packed mats
_W1_R, _W2_R, _W3A_R, _W4_R = 0, 56, 88, 104  # bf16 weight slab rows
_W_ROWS = 112
_B1_R, _B2_R, _W3B_R, _B3_R, _B4_R = 0, 56, 88, 104, 120   # f32 bias slab rows
_B_ROWS = 128


def _round_up(n, m):
    return ((n + m - 1) // m) * m


@functools.lru_cache(maxsize=1)
def _vpu_has_native_bf16():
    """v6e/v7x VPUs execute bf16 natively; v5e and older do not."""
    try:
        kind = jax.devices()[0].device_kind.lower()
    except Exception:
        return True
    return not any(v in kind for v in ("v2", "v3", "v4", "v5"))


def _choose_tile(batch, tb_max=_TB_MAX):
    """Batch tile: multiple-of-128 divisor of the 128-aligned batch (so padding
    is at most 127 rows), as large as possible, but keeping >= 2 grid steps
    whenever possible so v7x can shard the parallel axis across both TCs."""
    b_pad = _round_up(max(int(batch), 1), 128)
    m = b_pad // 128
    tb = 128
    for d in range(1, m + 1):
        if m % d == 0 and 128 * d <= tb_max and (m // d >= 2 or m == 1):
            tb = max(tb, 128 * d)
    return tb, b_pad


def _act(h_f32, bf16_relu):
    """relu + bf16 cast; commutes, so pick the order the VPU prefers."""
    if bf16_relu:
        return jnp.maximum(h_f32.astype(jnp.bfloat16), 0)
    return jnp.maximum(h_f32, 0.0).astype(jnp.bfloat16)


def _mlp_kernel(x_ref, pT_ref, w_ref, b_ref, o_ref, *, bf16_relu):
    # x arrives in native [TB, IN] f32; cast to bf16 in VMEM (no wrapper pass).
    xb = x_ref[...].astype(jnp.bfloat16)                    # [TB, IN]
    pT = pT_ref[...]                                        # [1, TB] f32

    # Static, sublane-aligned slices of the two resident slabs.
    w1 = w_ref[_W1_R:_W1_R + H1, :NN_INPUT_SIZE]            # [54, 18] bf16
    w2 = w_ref[_W2_R:_W2_R + H2, :H1]                       # [27, 54] bf16
    w3a = w_ref[_W3A_R:_W3A_R + H3, :H2]                    # [ 9, 27] bf16
    w4 = w_ref[_W4_R:_W4_R + 1, :H3]                        # [ 1,  9] bf16

    b1 = b_ref[_B1_R:_B1_R + H1, :]                         # [54, 1] f32
    b2 = b_ref[_B2_R:_B2_R + H2, :]                         # [27, 1] f32
    w3b = b_ref[_W3B_R:_W3B_R + H3, :]                      # [ 9, 1] f32
    b3 = b_ref[_B3_R:_B3_R + H3, :]                         # [ 9, 1] f32
    b4 = b_ref[_B4_R:_B4_R + 1, :]                          # [ 1, 1] f32

    # fc1 + relu: contract the feature axis of both operands ("NT" matmul) so
    # the result is [H1, TB] lane-dense without any wrapper-side transpose.
    nt = (((1,), (1,)), ((), ()))
    h1 = lax.dot_general(w1, xb, nt, preferred_element_type=jnp.float32) + b1
    h1 = _act(h1, bf16_relu)                                # [H1, TB] bf16

    # fc2 + relu
    h2 = jnp.dot(w2, h1, preferred_element_type=jnp.float32) + b2
    h2 = _act(h2, bf16_relu)                                # [H2, TB] bf16

    # fc3 over concat(h2, players): W3a @ h2 + w3b * players + b3 (the single
    # players column is a VPU broadcast multiply, not a K=1 MXU contraction).
    h3 = (jnp.dot(w3a, h2, preferred_element_type=jnp.float32)
          + w3b * pT
          + b3)
    h3 = _act(h3, bf16_relu)                                # [H3, TB] bf16

    # fc4 + tanh; lane-dense [1, TB] store.
    y = jnp.dot(w4, h3, preferred_element_type=jnp.float32) + b4
    o_ref[...] = jnp.tanh(y)


def network_forward(x, players, params, *, min_pallas_batch=_XLA_FASTPATH_MAX_B + 1):
    """x: [B, NN_INPUT_SIZE] f32, players: [B, 1] f32 -> [B, 1] f32."""
    B = x.shape[0]

    # Tiny-batch fast path: the whole net is <50 KFLOP; pallas_call launch and
    # layout plumbing would dominate wall-clock, so use plain fused XLA.
    if B < min_pallas_batch:
        return _reference_forward(x, players, params["raw"]).reshape(B, 1)

    w_slab, b_slab = params["w_slab"], params["b_slab"]
    tb, b_pad = _choose_tile(B)
    grid = (b_pad // tb,)
    pad = b_pad - B

    x_in = x.astype(jnp.float32)          # native layout; no transpose/cast pass
    p_in = players.astype(jnp.float32)
    if pad:
        x_in = jnp.pad(x_in, ((0, pad), (0, 0)))
        p_in = jnp.pad(p_in, ((0, pad), (0, 0)))
    pT = p_in.T                            # [1, b_pad]; tiny (4 B/sample)

    kernel = functools.partial(_mlp_kernel, bf16_relu=_vpu_has_native_bf16())

    flops = 2 * b_pad * (NN_INPUT_SIZE * H1 + H1 * H2 + (H2 + 1) * H3 + H3)
    bytes_accessed = (x_in.size * 4 + pT.size * 4 + b_pad * 4
                      + w_slab.size * 2 + b_slab.size * 4)

    out = pl.pallas_call(
        kernel,
        out_shape=jax.ShapeDtypeStruct((1, b_pad), jnp.float32),
        grid_spec=pltpu.PrefetchScalarGridSpec(
            num_scalar_prefetch=0,
            grid=grid,
            in_specs=[
                # Batch-tiled blocks advancing with the grid step.
                pl.BlockSpec((tb, NN_INPUT_SIZE), lambda i: (i, 0)),   # x
                pl.BlockSpec((1, tb), lambda i: (0, i)),               # players^T
                # Resident full blocks (constant index -> fetched once).
                pl.BlockSpec((_W_ROWS, _W_COLS), lambda i: (0, 0)),    # weight slab
                pl.BlockSpec((_B_ROWS, 1), lambda i: (0, 0)),          # bias slab
            ],
            out_specs=pl.BlockSpec((1, tb), lambda i: (0, i)),
        ),
        compiler_params=pltpu.CompilerParams(
            dimension_semantics=("parallel",),
        ),
        cost_estimate=pl.CostEstimate(
            flops=flops, transcendentals=b_pad, bytes_accessed=bytes_accessed),
    )(x_in, pT, w_slab, b_slab)

    return out[0, :B].reshape(B, 1)


def _pack_params(w1, b1, w2, b2, w3, b3, w4, b4):
    """Pack weights into one resident bf16 slab and biases (+ the fc3 players
    column) into one resident f32 slab.  Done once at init (no per-call casts)."""
    w3a, w3b = w3[:, :H2], w3[:, H2:]

    def put(slab, r0, mat):
        mat = jnp.asarray(mat).reshape(mat.shape[0], -1)
        return slab.at[r0:r0 + mat.shape[0], :mat.shape[1]].set(
            mat.astype(slab.dtype))

    w_slab = jnp.zeros((_W_ROWS, _W_COLS), jnp.bfloat16)
    w_slab = put(w_slab, _W1_R, w1)
    w_slab = put(w_slab, _W2_R, w2)
    w_slab = put(w_slab, _W3A_R, w3a)
    w_slab = put(w_slab, _W4_R, w4)

    b_slab = jnp.zeros((_B_ROWS, 1), jnp.float32)
    b_slab = put(b_slab, _B1_R, b1.reshape(-1, 1))
    b_slab = put(b_slab, _B2_R, b2.reshape(-1, 1))
    b_slab = put(b_slab, _W3B_R, w3b)
    b_slab = put(b_slab, _B3_R, b3.reshape(-1, 1))
    b_slab = put(b_slab, _B4_R, b4.reshape(-1, 1))
    return w_slab, b_slab


def init_params(key):
    """Mirror the PyTorch module: weights ~ N(0, 0.2) in [out, in] layout;
    biases keep torch's default U(-1/sqrt(fan_in), 1/sqrt(fan_in))."""
    ks = jax.random.split(key, 8)
    std = 0.2

    def w(k, fan_out, fan_in):
        return (std * jax.random.normal(k, (fan_out, fan_in))).astype(jnp.float32)

    def b(k, fan_out, fan_in):
        bound = 1.0 / float(fan_in) ** 0.5
        return jax.random.uniform(k, (fan_out,), minval=-bound,
                                  maxval=bound).astype(jnp.float32)

    w1, b1 = w(ks[0], H1, NN_INPUT_SIZE), b(ks[1], H1, NN_INPUT_SIZE)
    w2, b2 = w(ks[2], H2, H1), b(ks[3], H2, H1)
    w3, b3 = w(ks[4], H3, H2 + 1), b(ks[5], H3, H2 + 1)   # fc3 fan_in = 27 + 1
    w4, b4 = w(ks[6], 1, H3), b(ks[7], 1, H3)

    raw = (w1, b1, w2, b2, w3, b3, w4, b4)
    w_slab, b_slab = _pack_params(*raw)
    return {"raw": raw, "w_slab": w_slab, "b_slab": b_slab}


def _reference_forward(x, p, raw):
    """Plain-JAX f32 reference of the PyTorch forward (also the small-batch path)."""
    w1, b1, w2, b2, w3, b3, w4, b4 = raw
    h1 = jax.nn.relu(x @ w1.T + b1)
    h2 = jax.nn.relu(h1 @ w2.T + b2)
    h2c = jnp.concatenate([h2, p], axis=1)
    h3 = jax.nn.relu(h2c @ w3.T + b3)
    return jnp.tanh(h3 @ w4.T + b4)


# TODO(synk): train_step (SGD optimizer + MSE backward) is host-side training
# logic, not a kernel; it stays in plain JAX (jax.grad) outside this file.

if __name__ == "__main__":
    key = jax.random.PRNGKey(0)
    k_params, k_x, k_p, k_x2, k_p2 = jax.random.split(key, 5)

    params = init_params(k_params)

    # --- small batch: XLA fast path AND forced Pallas path (padding case) ----
    B_small = 8
    x_s = jax.random.normal(k_x, (B_small, NN_INPUT_SIZE), dtype=jnp.float32)
    p_s = jnp.where(jax.random.bernoulli(k_p, 0.5, (B_small, 1)),
                    1.0, -1.0).astype(jnp.float32)
    ref_s = _reference_forward(x_s, p_s, params["raw"])
    out_fast = network_forward(x_s, p_s, params)                          # XLA path
    out_pallas_s = network_forward(x_s, p_s, params, min_pallas_batch=0)  # Pallas
    jax.block_until_ready((out_fast, out_pallas_s))

    # --- training-sized batch: Pallas path with a multi-step parallel grid ---
    B_big = 384
    x_b = jax.random.normal(k_x2, (B_big, NN_INPUT_SIZE), dtype=jnp.float32)
    p_b = jnp.where(jax.random.bernoulli(k_p2, 0.5, (B_big, 1)),
                    1.0, -1.0).astype(jnp.float32)
    ref_b = _reference_forward(x_b, p_b, params["raw"])
    out_b = network_forward(x_b, p_b, params)
    jax.block_until_ready(out_b)

    assert out_fast.shape == (B_small, 1)
    assert out_pallas_s.shape == (B_small, 1)
    assert out_b.shape == (B_big, 1)
    assert bool(jnp.all(jnp.isfinite(out_b)))
    assert bool(jnp.all(jnp.abs(out_b) <= 1.0))
    assert float(jnp.max(jnp.abs(out_fast - ref_s))) < 1e-5
    # bf16 matmul operands with f32 accumulation -> allow a small tolerance.
    assert float(jnp.max(jnp.abs(out_pallas_s - ref_s))) < 5e-2
    assert float(jnp.max(jnp.abs(out_b - ref_b))) < 5e-2
    print("KERNEL_OK")
</pallas_src>

<mosaic_0001>
module attributes {stable_mosaic.version = 11 : i64} {
  func.func @_mlp_kernel(%arg0: i32, %arg1: memref<128x18xf32, #tpu.memory_space<vmem>>, %arg2: memref<1x128xf32, #tpu.memory_space<vmem>>, %arg3: memref<112x54xbf16, #tpu.memory_space<vmem>>, %arg4: memref<128x1xf32, #tpu.memory_space<vmem>>, %arg5: memref<1x128xf32, #tpu.memory_space<vmem>>) attributes {dimension_semantics = [#tpu.dimension_semantics<parallel>], iteration_bounds = array<i64: 1>, scalar_prefetch = 0 : i64, scratch_operands = 0 : i64, tpu.core_type = #tpu.core_type<tc>, window_params = [{transform_indices = @transform_0, window_bounds = array<i64: 128, 18>}, {transform_indices = @transform_1, window_bounds = array<i64: 1, 128>}, {pipeline_mode = #tpu.pipeline_mode<synchronous>, transform_indices = @transform_2, window_bounds = array<i64: 112, 54>}, {pipeline_mode = #tpu.pipeline_mode<synchronous>, transform_indices = @transform_3, window_bounds = array<i64: 128, 1>}, {transform_indices = @transform_4, window_bounds = array<i64: 1, 128>}]} {
    %c0 = arith.constant 0 : index
    %c0_0 = arith.constant 0 : index
    %0 = vector.load %arg1[%c0, %c0_0] : memref<128x18xf32, #tpu.memory_space<vmem>>, vector<128x18xf32>
    %1 = arith.truncf %0 : vector<128x18xf32> to vector<128x18xbf16>
    %c0_1 = arith.constant 0 : index
    %c0_2 = arith.constant 0 : index
    %2 = vector.load %arg2[%c0_1, %c0_2] : memref<1x128xf32, #tpu.memory_space<vmem>>, vector<1x128xf32>
    %c0_3 = arith.constant 0 : index
    %c0_4 = arith.constant 0 : index
    %3 = vector.load %arg3[%c0_3, %c0_4] : memref<112x54xbf16, #tpu.memory_space<vmem>>, vector<54x18xbf16>
    %c56 = arith.constant 56 : index
    %c0_5 = arith.constant 0 : index
    %4 = vector.load %arg3[%c56, %c0_5] : memref<112x54xbf16, #tpu.memory_space<vmem>>, vector<27x54xbf16>
    %c88 = arith.constant 88 : index
    %c0_6 = arith.constant 0 : index
    %5 = vector.load %arg3[%c88, %c0_6] : memref<112x54xbf16, #tpu.memory_space<vmem>>, vector<9x27xbf16>
    %c104 = arith.constant 104 : index
    %c0_7 = arith.constant 0 : index
    %6 = vector.load %arg3[%c104, %c0_7] : memref<112x54xbf16, #tpu.memory_space<vmem>>, vector<1x9xbf16>
    %c0_8 = arith.constant 0 : index
    %c0_9 = arith.constant 0 : index
    %7 = vector.load %arg4[%c0_8, %c0_9] : memref<128x1xf32, #tpu.memory_space<vmem>>, vector<54x1xf32>
    %c56_10 = arith.constant 56 : index
    %c0_11 = arith.constant 0 : index
    %8 = vector.load %arg4[%c56_10, %c0_11] : memref<128x1xf32, #tpu.memory_space<vmem>>, vector<27x1xf32>
    %c88_12 = arith.constant 88 : index
    %c0_13 = arith.constant 0 : index
    %9 = vector.load %arg4[%c88_12, %c0_13] : memref<128x1xf32, #tpu.memory_space<vmem>>, vector<9x1xf32>
    %c104_14 = arith.constant 104 : index
    %c0_15 = arith.constant 0 : index
    %10 = vector.load %arg4[%c104_14, %c0_15] : memref<128x1xf32, #tpu.memory_space<vmem>>, vector<9x1xf32>
    %c120 = arith.constant 120 : index
    %c0_16 = arith.constant 0 : index
    %11 = vector.load %arg4[%c120, %c0_16] : memref<128x1xf32, #tpu.memory_space<vmem>>, vector<1x1xf32>
    %cst = arith.constant dense<0.000000e+00> : vector<54x128xf32>
    %12 = tpu.matmul %3, %1, %cst {dimension_numbers = #tpu.dot_dimension_numbers<[1], [1], [0], [0], [0, 0, 1, 0], [], []>} : vector<54x18xbf16>, vector<128x18xbf16>, vector<54x128xf32> -> vector<54x128xf32>
    %13 = vector.broadcast %7 : vector<54x1xf32> to vector<54x128xf32>
    %14 = arith.addf %12, %13 : vector<54x128xf32>
    %15 = arith.truncf %14 : vector<54x128xf32> to vector<54x128xbf16>
    %cst_17 = arith.constant 0.000000e+00 : bf16
    %16 = vector.broadcast %cst_17 : bf16 to vector<54x128xbf16>
    %17 = arith.maximumf %15, %16 : vector<54x128xbf16>
    %cst_18 = arith.constant dense<0.000000e+00> : vector<27x128xf32>
    %18 = tpu.matmul %4, %17, %cst_18 {dimension_numbers = #tpu.dot_dimension_numbers<[1], [0], [0], [1], [0, 0, 1, 1], [], []>} : vector<27x54xbf16>, vector<54x128xbf16>, vector<27x128xf32> -> vector<27x128xf32>
    %19 = vector.broadcast %8 : vector<27x1xf32> to vector<27x128xf32>
    %20 = arith.addf %18, %19 : vector<27x128xf32>
    %21 = arith.truncf %20 : vector<27x128xf32> to vector<27x128xbf16>
    %cst_19 = arith.constant 0.000000e+00 : bf16
    %22 = vector.broadcast %cst_19 : bf16 to vector<27x128xbf16>
    %23 = arith.maximumf %21, %22 : vector<27x128xbf16>
    %cst_20 = arith.constant dense<0.000000e+00> : vector<9x128xf32>
    %24 = tpu.matmul %5, %23, %cst_20 {dimension_numbers = #tpu.dot_dimension_numbers<[1], [0], [0], [1], [0, 0, 1, 1], [], []>} : vector<9x27xbf16>, vector<27x128xbf16>, vector<9x128xf32> -> vector<9x128xf32>
    %25 = vector.broadcast %9 : vector<9x1xf32> to vector<9x128xf32>
    %26 = vector.broadcast %2 : vector<1x128xf32> to vector<9x128xf32>
    %27 = arith.mulf %25, %26 : vector<9x128xf32>
    %28 = arith.addf %24, %27 : vector<9x128xf32>
    %29 = vector.broadcast %10 : vector<9x1xf32> to vector<9x128xf32>
    %30 = arith.addf %28, %29 : vector<9x128xf32>
    %31 = arith.truncf %30 : vector<9x128xf32> to vector<9x128xbf16>
    %cst_21 = arith.constant 0.000000e+00 : bf16
    %32 = vector.broadcast %cst_21 : bf16 to vector<9x128xbf16>
    %33 = arith.maximumf %31, %32 : vector<9x128xbf16>
    %cst_22 = arith.constant dense<0.000000e+00> : vector<1x128xf32>
    %34 = tpu.matmul %6, %33, %cst_22 {dimension_numbers = #tpu.dot_dimension_numbers<[1], [0], [0], [1], [0, 0, 1, 1], [], []>} : vector<1x9xbf16>, vector<9x128xbf16>, vector<1x128xf32> -> vector<1x128xf32>
    %35 = vector.broadcast %11 : vector<1x1xf32> to vector<1x128xf32>
    %36 = arith.addf %34, %35 : vector<1x128xf32>
    %37 = math.tanh %36 : vector<1x128xf32>
    %c0_23 = arith.constant 0 : index
    %c0_24 = arith.constant 0 : index
    %38 = vector.load %arg5[%c0_23, %c0_24] : memref<1x128xf32, #tpu.memory_space<vmem>>, vector<1x128xf32>
    tpu.vector_store %arg5[%c0_23, %c0_24], %37 {strides = array<i32>} : memref<1x128xf32, #tpu.memory_space<vmem>>, vector<1x128xf32>,
    return
  }
  func.func @transform_0(%arg0: i32) -> (i32, i32) {
    %c0_i32 = arith.constant 0 : i32
    %c0_i32_0 = arith.constant 0 : i32
    return %arg0, %c0_i32 : i32, i32
  }
  func.func @transform_1(%arg0: i32) -> (i32, i32) {
    %c0_i32 = arith.constant 0 : i32
    %c0_i32_0 = arith.constant 0 : i32
    return %c0_i32, %arg0 : i32, i32
  }
  func.func @transform_2(%arg0: i32) -> (i32, i32) {
    %c0_i32 = arith.constant 0 : i32
    %c0_i32_0 = arith.constant 0 : i32
    %c0_i32_1 = arith.constant 0 : i32
    return %c0_i32, %c0_i32_0 : i32, i32
  }
  func.func @transform_3(%arg0: i32) -> (i32, i32) {
    %c0_i32 = arith.constant 0 : i32
    %c0_i32_0 = arith.constant 0 : i32
    %c0_i32_1 = arith.constant 0 : i32
    return %c0_i32, %c0_i32_0 : i32, i32
  }
  func.func @transform_4(%arg0: i32) -> (i32, i32) {
    %c0_i32 = arith.constant 0 : i32
    %c0_i32_0 = arith.constant 0 : i32
    return %c0_i32, %arg0 : i32, i32
  }
}

</mosaic_0001>

<llo_original>
// kernel: tpu_custom_call.1
$region0: #{tpu_custom_call.1}
  #allocation0 [shape = 'u32[]', space=smem, size = 0x4, offset = 0x4, fixed_abs, tag = 'smem constant byte address 0x4 - core index']
  #allocation1 [shape = 'u32[72,128]{1,0:T(1,128)}', space=vmem, size = 0x9000, scoped, tag = 'internal scratch']
  %s0 = inlined_call_operand.vmem [shape: f32[128,18], index: 0, kind: input, shape index: {}]
  %s1 = inlined_call_operand.vmem [shape: f32[1,128], index: 1, kind: input, shape index: {}]
  %s2 = inlined_call_operand.vmem [shape: bf16[112,54], index: 2, kind: input, shape index: {}]
  %s3 = inlined_call_operand.vmem [shape: f32[128,1], index: 3, kind: input, shape index: {}]
  %s4 = inlined_call_operand.hbm [shape: f32[1,128], index: 4, kind: output, shape index: {}]
  %s5 = sld [smem:[#allocation0]]
  $region26: #{tpu_custom_call.1} parent=0
    _
  %s7 = ssub.s32 1, %s5
  %s8 = scalar_select 0, %s7, %s5
  $region1: #{tpu_custom_call.1} parent=0
    #allocation2 [shape = 'u8[512]{0}', space=vmem, size = 0x400, scoped, tag = 'output window, operand 0, single buffered']
    #allocation3 [shape = 's32[1]{0}', space=sflag, size = 0x4, scoped, tag = 'scoped memory for tpu_custom_call.1']
    %9 = vsyncpa [#allocation3], 0
    // Predicated region
    $region2: #{tpu_custom_call.1} parent=1 // pred_check
      _
    $region3: #{tpu_custom_call.1} parent=1 // pred_check_branch
      %11 = sbr.rel (0) target = $region5
    $region4: #{tpu_custom_call.1} parent=1 // pred_region
      _
    $region5: #{tpu_custom_call.1} parent=1 // pred_fallthru
      _
    // Predicated region
    $region6: #{tpu_custom_call.1} parent=1 // pred_check
      _
    $region7: #{tpu_custom_call.1} parent=1 // pred_check_branch
      %13 = sbr.rel (0) target = $region9
    $region8: #{tpu_custom_call.1} parent=1 // pred_region
      _
    $region9: #{tpu_custom_call.1} parent=1 // pred_fallthru
      _
    // Predicated region
    $region10: #{tpu_custom_call.1} parent=1 // pred_check
      _
    $region11: #{tpu_custom_call.1} parent=1 // pred_check_branch
      %15 = sbr.rel (0) target = $region13
    $region12: #{tpu_custom_call.1} parent=1 // pred_region
      _
    $region13: #{tpu_custom_call.1} parent=1 // pred_fallthru
      _
    // Predicated region
    $region14: #{tpu_custom_call.1} parent=1 // pred_check
      _
    $region15: #{tpu_custom_call.1} parent=1 // pred_check_branch
      %17 = sbr.rel (0) target = $region17
    $region16: #{tpu_custom_call.1} parent=1 // pred_region
      _
    $region17: #{tpu_custom_call.1} parent=1 // pred_fallthru
      _
    %v19 = vld [vmem:[%s0] sm:$0xff]
    %v20 = vld [vmem:[%s0 + $0x8] sm:$0xff]
    %v21 = vld [vmem:[%s0 + $0x10] sm:$0xff]
    %v22 = vld [vmem:[%s0 + $0x18] sm:$0xff]
    %v23 = vld [vmem:[%s0 + $0x20] sm:$0xff]
    %v24 = vld [vmem:[%s0 + $0x28] sm:$0xff]
    %v25 = vld [vmem:[%s0 + $0x30] sm:$0xff]
    %v26 = vld [vmem:[%s0 + $0x38] sm:$0xff]
    %v27 = vld [vmem:[%s0 + $0x40] sm:$0xff]
    %v28 = vld [vmem:[%s0 + $0x48] sm:$0xff]
    %v29 = vld [vmem:[%s0 + $0x50] sm:$0xff]
    %v30 = vld [vmem:[%s0 + $0x58] sm:$0xff]
    %v31 = vld [vmem:[%s0 + $0x60] sm:$0xff]
    %v32 = vld [vmem:[%s0 + $0x68] sm:$0xff]
    %v33 = vld [vmem:[%s0 + $0x70] sm:$0xff]
    %v34 = vld [vmem:[%s0 + $0x78] sm:$0xff]
    %v35 = vpack.c.bf16 %v20, %v19
    %v36 = vpack.c.bf16 %v22, %v21
    %v37 = vpack.c.bf16 %v24, %v23
    %v38 = vpack.c.bf16 %v26, %v25
    %v39 = vpack.c.bf16 %v28, %v27
    %v40 = vpack.c.bf16 %v30, %v29
    %v41 = vpack.c.bf16 %v32, %v31
    %v42 = vpack.c.bf16 %v34, %v33
    %v43 = vld [vmem:[%s1] sm:$0x1]
    %v44 = vld [vmem:[%s2] sm:$0xf]
    %v45 = vld [vmem:[%s2 + $0x4] sm:$0xf]
    %v46 = vld [vmem:[%s2 + $0x8] sm:$0xf]
    %v47 = vld [vmem:[%s2 + $0xc] sm:$0xf]
    %v48 = vld [vmem:[%s2 + $0x10] sm:$0xf]
    %v49 = vld [vmem:[%s2 + $0x14] sm:$0xf]
    %v50 = vld [vmem:[%s2 + $0x18] sm:$0x7]
    %v51 = vld [vmem:[%s2 + $0x1c] sm:$0xf]
    %v52 = vld [vmem:[%s2 + $0x20] sm:$0xf]
    %v53 = vld [vmem:[%s2 + $0x24] sm:$0xf]
    %v54 = vld [vmem:[%s2 + $0x28] sm:$0x3]
    %v55 = vld [vmem:[%s2 + $0x2c] sm:$0xf]
    %v56 = vld [vmem:[%s2 + $0x30] sm:$0x1]
    %v57 = vld [vmem:[%s2 + $0x34] sm:$0x1]
    %v58 = vld [vmem:[%s3] sm:$0xff]
    %v59 = vld [vmem:[%s3 + $0x8] sm:$0xff]
    %v60 = vld [vmem:[%s3 + $0x10] sm:$0xff]
    %v61 = vld [vmem:[%s3 + $0x18] sm:$0xff]
    %v62 = vld [vmem:[%s3 + $0x20] sm:$0xff]
    %v63 = vld [vmem:[%s3 + $0x28] sm:$0xff]
    %v64 = vld [vmem:[%s3 + $0x30] sm:$0x3f]
    %v65 = vld [vmem:[%s3 + $0x38] sm:$0xff]
    %v66 = vld [vmem:[%s3 + $0x40] sm:$0xff]
    %v67 = vld [vmem:[%s3 + $0x48] sm:$0xff]
    %v68 = vld [vmem:[%s3 + $0x50] sm:$0x7]
    %v69 = vld [vmem:[%s3 + $0x58] sm:$0xff]
    %v70 = vld [vmem:[%s3 + $0x60] sm:$0x1]
    %v71 = vld [vmem:[%s3 + $0x68] sm:$0xff]
    %v72 = vld [vmem:[%s3 + $0x70] sm:$0x1]
    %v73 = vld [vmem:[%s3 + $0x78] sm:$0x1]
    %75 = vset.pattern.permute.xlu0 0
    %76 = vperm.xlu0 %75, %v58
    %v77 = vpop.permute.xlu0 %76
    %80 = vset.pattern.permute.xlu0 0
    %81 = vperm.xlu0 %80, %v59
    %v82 = vpop.permute.xlu0 %81
    %85 = vset.pattern.permute.xlu0 0
    %86 = vperm.xlu0 %85, %v60
    %v87 = vpop.permute.xlu0 %86
    %90 = vset.pattern.permute.xlu0 0
    %91 = vperm.xlu0 %90, %v61
    %v92 = vpop.permute.xlu0 %91
    %95 = vset.pattern.permute.xlu0 0
    %96 = vperm.xlu0 %95, %v62
    %v97 = vpop.permute.xlu0 %96
    %100 = vset.pattern.permute.xlu0 0
    %101 = vperm.xlu0 %100, %v63
    %v102 = vpop.permute.xlu0 %101
    %105 = vset.pattern.permute.xlu0 0
    %106 = vperm.xlu0 %105, %v64
    %v107 = vpop.permute.xlu0 %106
    %v116 = vunpack.c.l.b16 %v44
    %v117 = vunpack.c.l.b16 %v45
    %v118 = vunpack.c.l.b16 %v46
    %v119 = vunpack.c.l.b16 %v47
    %v120 = vunpack.c.l.b16 %v48
    %v121 = vunpack.c.l.b16 %v49
    %v122 = vunpack.c.l.b16 %v50
    %v123 = vpack.c.b16 %v117, %v116
    %v124 = vpack.c.b16 %v119, %v118
    %v125 = vpack.c.b16 %v121, %v120
    %v126 = vpack.c.b16 %v122, %v122
    %vm127 = vcmask 146432
    %v129 = vsel %vm127, %v123, 0
    %v132 = vsel %vm127, %v124, 0
    %v135 = vsel %vm127, %v125, 0
    %v138 = vsel %vm127, %v126, 0
    %v141 = vsel %vm127, %v35, 0
    %v144 = vsel %vm127, %v36, 0
    %v147 = vsel %vm127, %v37, 0
    %v150 = vsel %vm127, %v38, 0
    %v153 = vsel %vm127, %v39, 0
    %v156 = vsel %vm127, %v40, 0
    %v159 = vsel %vm127, %v41, 0
    %v162 = vsel %vm127, %v42, 0
    %164 = vmatpush.bf16.xpose.msra.mxu0 %v162
    %165 = vmatpush.bf16.xpose.msra.mxu0 %v159
    %166 = vmatpush.bf16.xpose.msra.mxu0 %v156
    %167 = vmatpush.bf16.xpose.msra.mxu0 %v153
    %168 = vmatpush.bf16.xpose.msra.mxu0 %v150
    %169 = vmatpush.bf16.xpose.msra.mxu0 %v147
    %170 = vmatpush.bf16.xpose.msra.mxu0 %v144
    %171 = vmatpush.bf16.xpose.msra.mxu0 %v141
    %172 = vmatmul.bf16.gmra.mxu0 %v129
    %v173 = vpop.f32.mrf.mxu0
    %v174 = vadd.f32 %v77, %v173
    %v175 = vpop.f32.mrf.mxu0
    %v176 = vadd.f32 %v82, %v175
    %177 = vmatmul.bf16.gmra.mxu0 %v132
    %v178 = vpop.f32.mrf.mxu0
    %v179 = vadd.f32 %v87, %v178
    %v180 = vpop.f32.mrf.mxu0
    %v181 = vadd.f32 %v92, %v180
    %182 = vmatmul.bf16.gmra.mxu0 %v135
    %v183 = vpop.f32.mrf.mxu0
    %v184 = vadd.f32 %v97, %v183
    %v185 = vpop.f32.mrf.mxu0
    %v186 = vadd.f32 %v102, %v185
    %187 = vmatmul.bf16.gmra.mxu0 %v138
    %v188 = vpop.f32.mrf.mxu0
    %v189 = vadd.f32 %v107, %v188
    %v190 = vpop.f32.mrf.mxu0
    %191 = vdwg.mxu0
    %v192 = vpack.c.bf16 %v174, %v174
    %v193 = vpack.c.bf16 %v176, %v176
    %v194 = vpack.c.bf16 %v179, %v179
    %v195 = vpack.c.bf16 %v181, %v181
    %v196 = vpack.c.bf16 %v184, %v184
    %v197 = vpack.c.bf16 %v186, %v186
    %v198 = vpack.c.bf16 %v189, %v189
    %v199 = vunpack.c.l.bf16 %v192
    %v200 = vunpack.c.l.bf16 %v193
    %v201 = vunpack.c.l.bf16 %v194
    %v202 = vunpack.c.l.bf16 %v195
    %v203 = vunpack.c.l.bf16 %v196
    %v204 = vunpack.c.l.bf16 %v197
    %v205 = vunpack.c.l.bf16 %v198
    %v206 = vmax.f32 %v199, 0.0
    %v207 = vmax.f32 %v200, 0.0
    %v208 = vmax.f32 %v201, 0.0
    %v209 = vmax.f32 %v202, 0.0
    %v210 = vmax.f32 %v203, 0.0
    %v211 = vmax.f32 %v204, 0.0
    %v212 = vmax.f32 %v205, 0.0
    %v213 = vpack.c.bf16 %v207, %v206
    %v214 = vpack.c.bf16 %v209, %v208
    %v215 = vpack.c.bf16 %v211, %v210
    %v216 = vpack.c.bf16 %v212, %v212
    %218 = vset.pattern.permute.xlu0 0
    %219 = vperm.xlu0 %218, %v65
    %v220 = vpop.permute.xlu0 %219
    %223 = vset.pattern.permute.xlu0 0
    %224 = vperm.xlu0 %223, %v66
    %v225 = vpop.permute.xlu0 %224
    %228 = vset.pattern.permute.xlu0 0
    %229 = vperm.xlu0 %228, %v67
    %v230 = vpop.permute.xlu0 %229
    %233 = vset.pattern.permute.xlu0 0
    %234 = vperm.xlu0 %233, %v68
    %v235 = vpop.permute.xlu0 %234
    %v241 = vunpack.c.l.b16 %v51
    %v242 = vunpack.c.l.b16 %v52
    %v243 = vunpack.c.l.b16 %v53
    %v244 = vunpack.c.l.b16 %v54
    %v245 = vpack.c.b16 %v242, %v241
    %v246 = vpack.c.b16 %v244, %v243
    %vm247 = vcmask 441344
    %v249 = vsel %vm247, %v245, 0
    %v252 = vsel %vm247, %v246, 0
    %vm254 = vcmask 1042432
    %v256 = vsel %vm254, %v216, 0
    %258 = vmatpush.bf16.msra.mxu0 0
    %259 = vmatpush.bf16.msra.mxu0 0
    %260 = vmatpush.bf16.msra.mxu0 0
    %261 = vmatpush.bf16.msra.mxu0 0
    %262 = vmatpush.bf16.msra.mxu0 %v256
    %263 = vmatpush.bf16.msra.mxu0 %v215
    %264 = vmatpush.bf16.msra.mxu0 %v214
    %265 = vmatpush.bf16.msra.mxu0 %v213
    %266 = vmatmul.bf16.gmra.mxu0 %v249
    %v267 = vpop.f32.mrf.mxu0
    %v268 = vadd.f32 %v220, %v267
    %v269 = vpop.f32.mrf.mxu0
    %v270 = vadd.f32 %v225, %v269
    %271 = vmatmul.bf16.gmra.mxu0 %v252
    %v272 = vpop.f32.mrf.mxu0
    %v273 = vadd.f32 %v230, %v272
    %v274 = vpop.f32.mrf.mxu0
    %v275 = vadd.f32 %v235, %v274
    %276 = vdwg.mxu0
    %v277 = vpack.c.bf16 %v268, %v268
    %v278 = vpack.c.bf16 %v270, %v270
    %v279 = vpack.c.bf16 %v273, %v273
    %v280 = vpack.c.bf16 %v275, %v275
    %v281 = vunpack.c.l.bf16 %v277
    %v282 = vunpack.c.l.bf16 %v278
    %v283 = vunpack.c.l.bf16 %v279
    %v284 = vunpack.c.l.bf16 %v280
    %v285 = vmax.f32 %v281, 0.0
    %v286 = vmax.f32 %v282, 0.0
    %v287 = vmax.f32 %v283, 0.0
    %v288 = vmax.f32 %v284, 0.0
    %v289 = vpack.c.bf16 %v286, %v285
    %v290 = vpack.c.bf16 %v288, %v287
    %292 = vset.pattern.permute.xlu0 0
    %293 = vperm.xlu0 %292, %v69
    %v294 = vpop.permute.xlu0 %293
    %297 = vset.pattern.permute.xlu0 0
    %298 = vperm.xlu0 %297, %v70
    %v299 = vpop.permute.xlu0 %298
    %v302 = vperm.slane %v43, 0
    %v304 = vmul.f32 %v294, %v302
    %v305 = vmul.f32 %v299, %v302
    %v308 = vunpack.c.l.b16 %v55
    %v309 = vunpack.c.l.b16 %v56
    %v310 = vpack.c.b16 %v309, %v308
    %vm311 = vcmask 220160
    %v313 = vsel %vm311, %v310, 0
    %vm315 = vcmask 1044480
    %vm316 = vcmask 1045504
    %v317 = vsel %vm315, 4294967295, 65535
    %v318 = vsel %vm316, %v317, 0
    %v320 = vand.u32 %v290, %v318
    %322 = vmatpush.bf16.msra.mxu0 0
    %323 = vmatpush.bf16.msra.mxu0 0
    %324 = vmatpush.bf16.msra.mxu0 0
    %325 = vmatpush.bf16.msra.mxu0 0
    %326 = vmatpush.bf16.msra.mxu0 0
    %327 = vmatpush.bf16.msra.mxu0 0
    %328 = vmatpush.bf16.msra.mxu0 %v320
    %329 = vmatpush.bf16.msra.mxu0 %v289
    %330 = vmatmul.bf16.gmra.mxu0 %v313
    %v331 = vpop.f32.mrf.mxu0
    %v332 = vadd.f32 %v304, %v331
    %v333 = vpop.f32.mrf.mxu0
    %v334 = vadd.f32 %v305, %v333
    %335 = vdwg.mxu0
    %337 = vset.pattern.permute.xlu0 0
    %338 = vperm.xlu0 %337, %v71
    %v339 = vpop.permute.xlu0 %338
    %342 = vset.pattern.permute.xlu0 0
    %343 = vperm.xlu0 %342, %v72
    %v344 = vpop.permute.xlu0 %343
    %v346 = vadd.f32 %v332, %v339
    %v347 = vadd.f32 %v334, %v344
    %v348 = vpack.c.bf16 %v346, %v346
    %v349 = vpack.c.bf16 %v347, %v347
    %v350 = vunpack.c.l.bf16 %v348
    %v351 = vunpack.c.l.bf16 %v349
    %v352 = vmax.f32 %v350, 0.0
    %v353 = vmax.f32 %v351, 0.0
    %v354 = vpack.c.bf16 %v353, %v352
    %356 = vset.pattern.permute.xlu0 0
    %357 = vperm.xlu0 %356, %v73
    %v358 = vpop.permute.xlu0 %357
    %vm360 = vcmask 72704
    %v362 = vsel %vm360, %v57, 0
    %vm364 = vcmask 1043456
    %v365 = vsel %vm364, 4294967295, 65535
    %v366 = vsel %vm315, %v365, 0
    %v368 = vand.u32 %v354, %v366
    %370 = vmatpush.bf16.msra.mxu0 0
    %371 = vmatpush.bf16.msra.mxu0 0
    %372 = vmatpush.bf16.msra.mxu0 0
    %373 = vmatpush.bf16.msra.mxu0 0
    %374 = vmatpush.bf16.msra.mxu0 0
    %375 = vmatpush.bf16.msra.mxu0 0
    %376 = vmatpush.bf16.msra.mxu0 0
    %377 = vmatpush.bf16.msra.mxu0 %v368
    %378 = vmatmul.bf16.gmra.mxu0 %v362
    %v379 = vpop.f32.mrf.mxu0
    %v380 = vadd.f32 %v358, %v379
    %v381 = vpop.f32.mrf.mxu0
    %382 = vdwg.mxu0
    %v383 = vtanh.pop %v380
    %384 = vst [vmem:[#allocation2] sm:$0x1] %v383
    // Predicated region
    $region18: #{tpu_custom_call.1} parent=1 // pred_check
      _
    $region19: #{tpu_custom_call.1} parent=1 // pred_check_branch
      %386 = sbr.rel (0) target = $region21
    $region20: #{tpu_custom_call.1} parent=1 // pred_region
      %388 = vsyncadd [#allocation3], 0
      %s390 = sshll.u32 [#allocation2], 4
      %s391 = int_to_ptr.vmem [resolvable:$true] %s390
      %s392 = sshll.u32 %s4, 4
      %s393 = int_to_ptr.hbm [resolvable:$true] %s392
      %395 = dma.vmem_to_hbm [thread:$0]  %s391, 16, %s393, [#allocation3]
    $region21: #{tpu_custom_call.1} parent=1 // pred_fallthru
      _
    // Predicated region
    $region22: #{tpu_custom_call.1} parent=1 // pred_check
      _
    $region23: #{tpu_custom_call.1} parent=1 // pred_check_branch
      %397 = sbr.rel (0) target = $region25
    $region24: #{tpu_custom_call.1} parent=1 // pred_region
      %399 = dma.done [#allocation3], 16
    $region25: #{tpu_custom_call.1} parent=1 // pred_fallthru
      _
    %400 = vsyncpa [#allocation3], 1

</llo_original>
